<compile_context>
chip_gen: v7x
topology: tpu7x:2x2x1
jax: 0.10.0
libtpu: 0.0.40
codegen_flags: <defaults>
</compile_context>

<pallas_src>
import jax
import jax.numpy as jnp
from jax.experimental import pallas as pl
from jax.experimental.pallas import tpu as pltpu


# ---------------------------------------------------------------------------
# helpers
# ---------------------------------------------------------------------------
_K_TILE_DEFAULT = 2048             # target K tile (multiple of 128) when tiled
_K_TILE_THRESHOLD_DEFAULT = 4096   # tile K only when padded K exceeds this
_MAX_TM = 2048                     # cap on row-tile size


def _round_up(x, m):
    return (x + m - 1) // m * m


def _cdiv(a, b):
    return -(-a // b)


def _vmem_capacity_bytes():
    """Per-core VMEM capacity; conservative fallback if the query fails."""
    try:
        info = pltpu.get_tpu_info()
        cap = getattr(info, "vmem_capacity_bytes", None)
        if cap:
            return int(cap)
    except Exception:
        pass
    return 64 * 1024 * 1024        # v7x per-TensorCore VMEM (most restrictive)


# ---------------------------------------------------------------------------
# Pallas kernels: tiled matmul + bias (the nn.Linear hot path)
# ---------------------------------------------------------------------------
def _linear_bias_single_kernel(x_ref, w_ref, b_ref, o_ref):
    # Single K tile: fused dot + bias + cast, no accumulator scratch.
    o_ref[...] = (
        jnp.dot(x_ref[...], w_ref[...], preferred_element_type=jnp.float32)
        + b_ref[...]
    ).astype(o_ref.dtype)


def _linear_bias_acc_kernel(x_ref, w_ref, b_ref, o_ref, acc_ref):
    # K-tiled: f32 accumulator resident across the reduction axis.
    k = pl.program_id(1)

    @pl.when(k == 0)
    def _init():
        acc_ref[...] = jnp.zeros_like(acc_ref)

    acc_ref[...] += jnp.dot(
        x_ref[...], w_ref[...], preferred_element_type=jnp.float32
    )

    @pl.when(k == pl.num_programs(1) - 1)
    def _finalize():
        o_ref[...] = (acc_ref[...] + b_ref[...]).astype(o_ref.dtype)


def _pallas_linear(g2d, w_t, bias2d, *, tm, tk, out_dtype, vmem_limit):
    """y = g2d @ w_t + bias, tiled over (M[, K]); all dims pre-padded."""
    m_pad, k_pad = g2d.shape
    k_w, n_pad = w_t.shape
    assert k_pad == k_w
    assert m_pad % tm == 0 and k_pad % tk == 0 and n_pad % 128 == 0
    grid_m = m_pad // tm
    grid_k = k_pad // tk

    out_itemsize = jnp.dtype(out_dtype).itemsize
    flops = 2 * m_pad * k_pad * n_pad
    # Weight is re-DMA'd per row tile only when the K axis is tiled (its block
    # index then changes every inner step); otherwise it stays VMEM-resident.
    w_loads = grid_m if grid_k > 1 else 1
    bytes_accessed = (
        m_pad * k_pad * g2d.dtype.itemsize
        + w_loads * k_pad * n_pad * w_t.dtype.itemsize
        + m_pad * n_pad * out_itemsize
        + n_pad * 4
    )
    cost = pl.CostEstimate(
        flops=int(flops), transcendentals=0, bytes_accessed=int(bytes_accessed)
    )

    if grid_k == 1:
        return pl.pallas_call(
            _linear_bias_single_kernel,
            out_shape=jax.ShapeDtypeStruct((m_pad, n_pad), out_dtype),
            grid=(grid_m,),
            in_specs=[
                pl.BlockSpec((tm, k_pad), lambda i: (i, 0)),
                pl.BlockSpec((k_pad, n_pad), lambda i: (0, 0)),
                pl.BlockSpec((1, n_pad), lambda i: (0, 0)),
            ],
            out_specs=pl.BlockSpec((tm, n_pad), lambda i: (i, 0)),
            compiler_params=pltpu.CompilerParams(
                dimension_semantics=("parallel",),
                vmem_limit_bytes=int(vmem_limit),
            ),
            cost_estimate=cost,
        )(g2d, w_t, bias2d)

    return pl.pallas_call(
        _linear_bias_acc_kernel,
        out_shape=jax.ShapeDtypeStruct((m_pad, n_pad), out_dtype),
        grid=(grid_m, grid_k),
        in_specs=[
            pl.BlockSpec((tm, tk), lambda i, k: (i, k)),
            pl.BlockSpec((tk, n_pad), lambda i, k: (k, 0)),
            pl.BlockSpec((1, n_pad), lambda i, k: (0, 0)),
        ],
        out_specs=pl.BlockSpec((tm, n_pad), lambda i, k: (i, 0)),
        scratch_shapes=[pltpu.VMEM((tm, n_pad), jnp.float32)],
        compiler_params=pltpu.CompilerParams(
            dimension_semantics=("parallel", "arbitrary"),
            vmem_limit_bytes=int(vmem_limit),
        ),
        cost_estimate=cost,
    )(g2d, w_t, bias2d)


# ---------------------------------------------------------------------------
# SpiralConv module (forward only), parameters built deterministically
# ---------------------------------------------------------------------------
class SpiralConvPallas:
    def __init__(
        self,
        in_channels,
        out_channels,
        indices,
        dim=1,
        key=None,
        compute_dtype=jnp.bfloat16,
        k_tile=_K_TILE_DEFAULT,
        k_tile_threshold=_K_TILE_THRESHOLD_DEFAULT,
        max_tm=None,
    ):
        self.dim = dim
        self.indices = jnp.asarray(indices, dtype=jnp.int32)
        self.in_channels = in_channels
        self.out_channels = out_channels
        self.seq_length = int(self.indices.shape[1])
        self.compute_dtype = jnp.dtype(compute_dtype)
        self.max_tm = max_tm

        k_in = in_channels * self.seq_length
        self.k_in = k_in

        # Static K plan: always pad K to a multiple of 128 (lane-dense loads);
        # tile K only when it is large, balancing the tile size so padding
        # waste is bounded by 128 * grid_k instead of up to k_tile - 1.
        k128 = _round_up(k_in, 128)
        if k128 > k_tile_threshold:
            grid_k = _cdiv(k128, int(k_tile))
            self.tk = _round_up(_cdiv(k128, grid_k), 128)
            self.k_pad = self.tk * grid_k
        else:
            self.tk = k128
            self.k_pad = k128

        # Lane-dense output: pad N up to a multiple of 128 (zero columns).
        self.n_pad = _round_up(out_channels, 128)

        if key is None:
            key = jax.random.PRNGKey(0)
        # Xavier (Glorot) uniform on weight (out_features, in_features); bias=0,
        # matching torch.nn.init.xavier_uniform_ / constant_(bias, 0).
        bound = (6.0 / (k_in + out_channels)) ** 0.5
        w = jax.random.uniform(
            key, (out_channels, k_in), jnp.float32, -bound, bound
        )
        b = jnp.zeros((out_channels,), jnp.float32)

        # Unpadded f32 parameters (kept for reference / export).
        self.weight_t = jnp.transpose(w)  # (K, N)
        self.bias = b

        # Padded, MXU-ready parameters (done once at init, not per forward).
        w_t_pad = jnp.pad(
            self.weight_t,
            ((0, self.k_pad - k_in), (0, self.n_pad - out_channels)),
        )
        self._w_kernel = w_t_pad.astype(self.compute_dtype)
        self._b_kernel = jnp.pad(b, (0, self.n_pad - out_channels)).reshape(
            1, self.n_pad
        )

        self._vmem_cap = _vmem_capacity_bytes()
        self._vmem_limit = int(min(self._vmem_cap * 0.9, 112 * (1 << 20)))

    # -- row-tile planning ---------------------------------------------------
    def _plan_row_tiles(self, m):
        """Return (tm, m_pad): VMEM-bounded row tile and padded row count."""
        in_bytes = self.compute_dtype.itemsize
        out_bytes = 4
        budget = int(self._vmem_cap * 0.55)  # headroom for compiler scratch
        fixed = 2 * self.tk * self.n_pad * in_bytes + 2 * self.n_pad * 4
        per_row = (
            2 * self.tk * in_bytes        # activation tile, double-buffered
            + 2 * self.n_pad * out_bytes  # output tile, double-buffered
            + self.n_pad * 4              # f32 accumulator scratch (worst case)
        )
        cap = max(8, (budget - fixed) // per_row)
        cap = max(8, (cap // 8) * 8)
        cap = min(cap, _MAX_TM)
        if self.max_tm is not None:
            cap = min(cap, max(8, (self.max_tm // 8) * 8))

        m8 = _round_up(m, 8)
        if m8 <= cap:
            return int(m8), int(m8)     # single row tile, no extra padding
        grid_m = _cdiv(m8, cap)
        tm = _round_up(_cdiv(m8, grid_m), 8)  # balanced tiles, waste < 8*grid_m
        return int(tm), int(tm * grid_m)

    # -- dense hot path --------------------------------------------------------
    def _linear(self, g2d, out_dtype):
        m, k = g2d.shape
        assert k == self.k_in
        tm, m_pad = self._plan_row_tiles(m)

        g = g2d.astype(self.compute_dtype)
        if m_pad != m or self.k_pad != k:
            g = jnp.pad(g, ((0, m_pad - m), (0, self.k_pad - k)))

        y = _pallas_linear(
            g,
            self._w_kernel,
            self._b_kernel,
            tm=tm,
            tk=self.tk,
            out_dtype=out_dtype,
            vmem_limit=self._vmem_limit,
        )
        return y[:m, : self.out_channels]

    # -- forward ---------------------------------------------------------------
    def __call__(self, x):
        n_nodes, seq_len = self.indices.shape
        flat_idx = self.indices.reshape(-1)
        # TODO(synk): move this spiral gather into the Pallas kernel to avoid
        # the seq_length-x HBM inflation of the gathered slab.
        if x.ndim == 2:
            g = jnp.take(x, flat_idx, axis=0)
            g = g.reshape(n_nodes, seq_len * x.shape[-1])
            return self._linear(g, x.dtype)
        elif x.ndim == 3:
            bs = x.shape[0]
            g = jnp.take(x, flat_idx, axis=self.dim)
            g = g.reshape(bs, n_nodes, -1)
            g2d = g.reshape(bs * n_nodes, g.shape[-1])
            y2d = self._linear(g2d, x.dtype)
            return y2d.reshape(bs, n_nodes, self.out_channels)
        else:
            raise RuntimeError(
                "x.dim() is expected to be 2 or 3, but received {}".format(x.ndim)
            )


# ---------------------------------------------------------------------------
# Pure-JAX reference for verification
# ---------------------------------------------------------------------------
def _reference(x, indices, weight_t, bias, dim=1, cast_dtype=None):
    n_nodes, _ = indices.shape
    flat_idx = indices.reshape(-1)
    if x.ndim == 2:
        g = jnp.take(x, flat_idx, axis=0).reshape(n_nodes, -1)
    else:
        bs = x.shape[0]
        g = jnp.take(x, flat_idx, axis=dim).reshape(bs, n_nodes, -1)
    w = weight_t
    if cast_dtype is not None:  # emulate bf16 MXU inputs with f32 accumulation
        g = g.astype(cast_dtype).astype(jnp.float32)
        w = w.astype(cast_dtype).astype(jnp.float32)
    y = jnp.einsum(
        "...k,kn->...n", g, w, precision=jax.lax.Precision.HIGHEST
    )
    return (y + bias).astype(x.dtype)


# ---------------------------------------------------------------------------
# Demo / self-test
# ---------------------------------------------------------------------------
if __name__ == "__main__":
    key = jax.random.PRNGKey(0)
    k_idx, k_x2, k_x3, k_w, k_xb, k_wb = jax.random.split(key, 6)

    # Small, module-consistent shapes.
    bs = 2
    n_nodes = 16
    seq_length = 8
    in_channels = 4
    out_channels = 32

    # Spiral indices: each node's spiral is a list of node ids in [0, n_nodes).
    indices = jax.random.randint(
        k_idx, (n_nodes, seq_length), 0, n_nodes, dtype=jnp.int32
    )

    conv = SpiralConvPallas(in_channels, out_channels, indices, dim=1, key=k_w)

    # 3D input path: (bs, n_nodes, in_channels) -> single-K fused kernel.
    x3 = jax.random.normal(k_x3, (bs, n_nodes, in_channels), jnp.float32)
    y3 = conv(x3)
    jax.block_until_ready(y3)
    assert y3.shape == (bs, n_nodes, out_channels)
    ref3_f32 = _reference(x3, indices, conv.weight_t, conv.bias, dim=1)
    ref3_bf16 = _reference(
        x3, indices, conv.weight_t, conv.bias, dim=1, cast_dtype=jnp.bfloat16
    )
    assert jnp.allclose(y3, ref3_bf16, atol=1e-3, rtol=1e-3)
    assert jnp.allclose(y3, ref3_f32, atol=5e-2, rtol=5e-2)

    # 2D input path: (n_nodes, in_channels).
    x2 = jax.random.normal(k_x2, (n_nodes, in_channels), jnp.float32)
    y2 = conv(x2)
    jax.block_until_ready(y2)
    assert y2.shape == (n_nodes, out_channels)
    ref2_bf16 = _reference(
        x2, indices, conv.weight_t, conv.bias, cast_dtype=jnp.bfloat16
    )
    assert jnp.allclose(y2, ref2_bf16, atol=1e-3, rtol=1e-3)

    # Exercise the multi-tile path (grid over M and K with the f32 accumulator)
    # using small overrides: K = 8*32 = 256 tiled as 2x128, M tiled as 8 rows.
    conv_tiled = SpiralConvPallas(
        32, 64, indices, dim=1, key=k_wb,
        k_tile=128, k_tile_threshold=128, max_tm=8,
    )
    xb = jax.random.normal(k_xb, (bs, n_nodes, 32), jnp.float32)
    yb = conv_tiled(xb)
    jax.block_until_ready(yb)
    assert yb.shape == (bs, n_nodes, 64)
    refb_bf16 = _reference(
        xb, indices, conv_tiled.weight_t, conv_tiled.bias, dim=1,
        cast_dtype=jnp.bfloat16,
    )
    assert jnp.allclose(yb, refb_bf16, atol=1e-3, rtol=1e-3)

    print("KERNEL_OK")
</pallas_src>

<mosaic_0001>
module attributes {stable_mosaic.version = 11 : i64} {
  func.func @_linear_bias_single_kernel(%arg0: i32, %arg1: memref<32x128xbf16, #tpu.memory_space<vmem>>, %arg2: memref<128x128xbf16, #tpu.memory_space<vmem>>, %arg3: memref<1x128xf32, #tpu.memory_space<vmem>>, %arg4: memref<32x128xf32, #tpu.memory_space<vmem>>) attributes {dimension_semantics = [#tpu.dimension_semantics<parallel>], iteration_bounds = array<i64: 1>, scalar_prefetch = 0 : i64, scratch_operands = 0 : i64, tpu.core_type = #tpu.core_type<tc>, window_params = [{transform_indices = @transform_0, window_bounds = array<i64: 32, 128>}, {pipeline_mode = #tpu.pipeline_mode<synchronous>, transform_indices = @transform_1, window_bounds = array<i64: 128, 128>}, {pipeline_mode = #tpu.pipeline_mode<synchronous>, transform_indices = @transform_2, window_bounds = array<i64: 1, 128>}, {transform_indices = @transform_3, window_bounds = array<i64: 32, 128>}]} {
    %c0 = arith.constant 0 : index
    %c0_0 = arith.constant 0 : index
    %0 = vector.load %arg1[%c0, %c0_0] : memref<32x128xbf16, #tpu.memory_space<vmem>>, vector<32x128xbf16>
    %c0_1 = arith.constant 0 : index
    %c0_2 = arith.constant 0 : index
    %1 = vector.load %arg2[%c0_1, %c0_2] : memref<128x128xbf16, #tpu.memory_space<vmem>>, vector<128x128xbf16>
    %cst = arith.constant dense<0.000000e+00> : vector<32x128xf32>
    %2 = tpu.matmul %0, %1, %cst {dimension_numbers = #tpu.dot_dimension_numbers<[1], [0], [0], [1], [0, 0, 1, 1], [], []>} : vector<32x128xbf16>, vector<128x128xbf16>, vector<32x128xf32> -> vector<32x128xf32>
    %c0_3 = arith.constant 0 : index
    %c0_4 = arith.constant 0 : index
    %3 = vector.load %arg3[%c0_3, %c0_4] : memref<1x128xf32, #tpu.memory_space<vmem>>, vector<1x128xf32>
    %4 = vector.broadcast %3 : vector<1x128xf32> to vector<32x128xf32>
    %5 = arith.addf %2, %4 : vector<32x128xf32>
    %c0_5 = arith.constant 0 : index
    %c0_6 = arith.constant 0 : index
    %6 = vector.load %arg4[%c0_5, %c0_6] : memref<32x128xf32, #tpu.memory_space<vmem>>, vector<32x128xf32>
    tpu.vector_store %arg4[%c0_5, %c0_6], %5 {strides = array<i32>} : memref<32x128xf32, #tpu.memory_space<vmem>>, vector<32x128xf32>,
    return
  }
  func.func @transform_0(%arg0: i32) -> (i32, i32) {
    %c0_i32 = arith.constant 0 : i32
    %c0_i32_0 = arith.constant 0 : i32
    return %arg0, %c0_i32 : i32, i32
  }
  func.func @transform_1(%arg0: i32) -> (i32, i32) {
    %c0_i32 = arith.constant 0 : i32
    %c0_i32_0 = arith.constant 0 : i32
    %c0_i32_1 = arith.constant 0 : i32
    return %c0_i32, %c0_i32_0 : i32, i32
  }
  func.func @transform_2(%arg0: i32) -> (i32, i32) {
    %c0_i32 = arith.constant 0 : i32
    %c0_i32_0 = arith.constant 0 : i32
    %c0_i32_1 = arith.constant 0 : i32
    return %c0_i32, %c0_i32_0 : i32, i32
  }
  func.func @transform_3(%arg0: i32) -> (i32, i32) {
    %c0_i32 = arith.constant 0 : i32
    %c0_i32_0 = arith.constant 0 : i32
    return %arg0, %c0_i32 : i32, i32
  }
}

</mosaic_0001>

<llo_original>
// kernel: tpu_custom_call.1
$region0: #{tpu_custom_call.1}
  #allocation0 [shape = 'u32[]', space=smem, size = 0x4, offset = 0x4, fixed_abs, tag = 'smem constant byte address 0x4 - core index']
  #allocation1 [shape = 'u32[144,128]{1,0:T(1,128)}', space=vmem, size = 0x12000, scoped, tag = 'internal scratch']
  %s0 = inlined_call_operand.hbm [shape: bf16[32,128], index: 0, kind: input, shape index: {}]
  %s1 = inlined_call_operand.hbm [shape: bf16[128,128], index: 1, kind: input, shape index: {}]
  %s2 = inlined_call_operand.vmem [shape: f32[1,128], index: 2, kind: input, shape index: {}]
  %s3 = inlined_call_operand.hbm [shape: f32[32,128], index: 3, kind: output, shape index: {}]
  %s4 = sld [smem:[#allocation0]]
  $region30: #{tpu_custom_call.1} parent=0
    _
  %s6 = ssub.s32 1, %s4
  %s7 = scalar_select 0, %s6, %s4
  $region1: #{tpu_custom_call.1} parent=0
    #allocation2 [shape = 'u8[8192]{0}', space=vmem, size = 0x2000, scoped, tag = 'input window, operand 0, single buffered']
    #allocation3 [shape = 's32[1]{0}', space=sflag, size = 0x4, scoped, tag = 'scoped memory for tpu_custom_call.1']
    #allocation4 [shape = 's32[1]{0}', space=sflag, size = 0x4, scoped, tag = 'scoped memory for tpu_custom_call.1']
    #allocation5 [shape = 'u8[32768]{0}', space=vmem, size = 0x8000, scoped, tag = 'input window, operand 1, single buffered']
    #allocation6 [shape = 's32[1]{0}', space=sflag, size = 0x4, scoped, tag = 'scoped memory for tpu_custom_call.1']
    #allocation7 [shape = 'u8[16384]{0}', space=vmem, size = 0x4000, scoped, tag = 'output window, operand 0, single buffered']
    %8 = vsyncpa [#allocation3], 0
    %9 = vsyncpa [#allocation6], 0
    %10 = vsyncpa [#allocation4], 0
    // Predicated region
    $region2: #{tpu_custom_call.1} parent=1 // pred_check
      _
    $region3: #{tpu_custom_call.1} parent=1 // pred_check_branch
      %12 = sbr.rel (0) target = $region5
    $region4: #{tpu_custom_call.1} parent=1 // pred_region
      %s14 = ssub.s32 256, 256
      %15 = vsyncadd [#allocation3], %s14
      %s16 = sshll.u32 [#allocation2], 4
      %s17 = int_to_ptr.vmem [resolvable:$true] %s16
      %22 = dma.hbm_to_vmem [thread:$0]  %s0, 256, %s17, [#allocation3], 64, 64, 4
    $region5: #{tpu_custom_call.1} parent=1 // pred_fallthru
      _
    // Predicated region
    $region6: #{tpu_custom_call.1} parent=1 // pred_check
      _
    $region7: #{tpu_custom_call.1} parent=1 // pred_check_branch
      %24 = sbr.rel (0) target = $region9
    $region8: #{tpu_custom_call.1} parent=1 // pred_region
      %s26 = ssub.s32 1024, 1024
      %27 = vsyncadd [#allocation6], %s26
      %s28 = sshll.u32 [#allocation5], 4
      %s29 = int_to_ptr.vmem [resolvable:$true] %s28
      %34 = dma.hbm_to_vmem [thread:$0]  %s1, 1024, %s29, [#allocation6], 64, 64, 4
    $region9: #{tpu_custom_call.1} parent=1 // pred_fallthru
      _
    // Predicated region
    $region10: #{tpu_custom_call.1} parent=1 // pred_check
      _
    $region11: #{tpu_custom_call.1} parent=1 // pred_check_branch
      %36 = sbr.rel (0) target = $region13
    $region12: #{tpu_custom_call.1} parent=1 // pred_region
      _
    $region13: #{tpu_custom_call.1} parent=1 // pred_fallthru
      _
    // Predicated region
    $region14: #{tpu_custom_call.1} parent=1 // pred_check
      _
    $region15: #{tpu_custom_call.1} parent=1 // pred_check_branch
      %38 = sbr.rel (0) target = $region17
    $region16: #{tpu_custom_call.1} parent=1 // pred_region
      %39 = dma.done [#allocation3], 256
    $region17: #{tpu_custom_call.1} parent=1 // pred_fallthru
      _
    // Predicated region
    $region18: #{tpu_custom_call.1} parent=1 // pred_check
      _
    $region19: #{tpu_custom_call.1} parent=1 // pred_check_branch
      %41 = sbr.rel (0) target = $region21
    $region20: #{tpu_custom_call.1} parent=1 // pred_region
      %42 = dma.done [#allocation6], 1024
    $region21: #{tpu_custom_call.1} parent=1 // pred_fallthru
      _
    %v44 = vld [vmem:[#allocation2] sm:$0xf]
    %v45 = vld [vmem:[#allocation2 + $0x4] sm:$0xf]
    %v46 = vld [vmem:[#allocation2 + $0x8] sm:$0xf]
    %v47 = vld [vmem:[#allocation2 + $0xc] sm:$0xf]
    %v48 = vld [vmem:[#allocation5] sm:$0xf]
    %v49 = vld [vmem:[#allocation5 + $0x4] sm:$0xf]
    %v50 = vld [vmem:[#allocation5 + $0x8] sm:$0xf]
    %v51 = vld [vmem:[#allocation5 + $0xc] sm:$0xf]
    %v52 = vld [vmem:[#allocation5 + $0x10] sm:$0xf]
    %v53 = vld [vmem:[#allocation5 + $0x14] sm:$0xf]
    %v54 = vld [vmem:[#allocation5 + $0x18] sm:$0xf]
    %v55 = vld [vmem:[#allocation5 + $0x1c] sm:$0xf]
    %v56 = vld [vmem:[#allocation5 + $0x20] sm:$0xf]
    %v57 = vld [vmem:[#allocation5 + $0x24] sm:$0xf]
    %v58 = vld [vmem:[#allocation5 + $0x28] sm:$0xf]
    %v59 = vld [vmem:[#allocation5 + $0x2c] sm:$0xf]
    %v60 = vld [vmem:[#allocation5 + $0x30] sm:$0xf]
    %v61 = vld [vmem:[#allocation5 + $0x34] sm:$0xf]
    %v62 = vld [vmem:[#allocation5 + $0x38] sm:$0xf]
    %v63 = vld [vmem:[#allocation5 + $0x3c] sm:$0xf]
    %v64 = vld [vmem:[%s2] sm:$0x1]
    %v66 = vlaneseq
    %v67 = vshrl.u32 %v66, 7
    %v68 = vsub.s32 0, %v67
    %v69 = vrot.slane %v64, %v68
    %v75 = vunpack.c.l.b16 %v44
    %v76 = vunpack.c.l.b16 %v45
    %v77 = vunpack.c.l.b16 %v46
    %v78 = vunpack.c.l.b16 %v47
    %v79 = vpack.c.b16 %v76, %v75
    %v80 = vpack.c.b16 %v78, %v77
    %v99 = vunpack.c.l.b16 %v48
    %v100 = vunpack.c.l.b16 %v49
    %v101 = vunpack.c.l.b16 %v50
    %v102 = vunpack.c.l.b16 %v51
    %v103 = vunpack.c.l.b16 %v52
    %v104 = vunpack.c.l.b16 %v53
    %v105 = vunpack.c.l.b16 %v54
    %v106 = vunpack.c.l.b16 %v55
    %v107 = vunpack.c.l.b16 %v56
    %v108 = vunpack.c.l.b16 %v57
    %v109 = vunpack.c.l.b16 %v58
    %v110 = vunpack.c.l.b16 %v59
    %v111 = vunpack.c.l.b16 %v60
    %v112 = vunpack.c.l.b16 %v61
    %v113 = vunpack.c.l.b16 %v62
    %v114 = vunpack.c.l.b16 %v63
    %v115 = vpack.c.b16 %v100, %v99
    %v116 = vpack.c.b16 %v102, %v101
    %v117 = vpack.c.b16 %v104, %v103
    %v118 = vpack.c.b16 %v106, %v105
    %v119 = vpack.c.b16 %v108, %v107
    %v120 = vpack.c.b16 %v110, %v109
    %v121 = vpack.c.b16 %v112, %v111
    %v122 = vpack.c.b16 %v114, %v113
    %131 = vmatprep.subr.bf16.mxu0 0
    %132 = vmatpush1.bf16.msra.mxu0 %v115
    %133 = vmatprep.subr.bf16.mxu0 0
    %134 = vmatpush1.bf16.msra.mxu0 %v116
    %135 = vmatprep.subr.bf16.mxu0 0
    %136 = vmatpush1.bf16.msra.mxu0 %v117
    %137 = vmatprep.subr.bf16.mxu0 0
    %138 = vmatpush1.bf16.msra.mxu0 %v118
    %139 = vmatprep.subr.bf16.mxu0 0
    %140 = vmatpush1.bf16.msra.mxu0 %v119
    %141 = vmatprep.subr.bf16.mxu0 0
    %142 = vmatpush1.bf16.msra.mxu0 %v120
    %143 = vmatprep.subr.bf16.mxu0 0
    %144 = vmatpush1.bf16.msra.mxu0 %v121
    %145 = vmatprep.subr.bf16.mxu0 0
    %146 = vmatpush1.bf16.msra.mxu0 %v122
    %147 = vmatprep.subr.bf16.mxu0 0
    %148 = vmatpush1.bf16.msra.mxu0 0
    %149 = vmatprep.subr.bf16.mxu0 0
    %150 = vmatpush1.bf16.msra.mxu0 0
    %151 = vmatprep.subr.bf16.mxu0 0
    %152 = vmatpush1.bf16.msra.mxu0 0
    %153 = vmatprep.subr.bf16.mxu0 0
    %154 = vmatpush1.bf16.msra.mxu0 0
    %155 = vmatprep.subr.bf16.mxu0 0
    %156 = vmatpush1.bf16.msra.mxu0 0
    %157 = vmatprep.subr.bf16.mxu0 0
    %158 = vmatpush1.bf16.msra.mxu0 0
    %159 = vmatprep.subr.bf16.mxu0 0
    %160 = vmatpush1.bf16.msra.mxu0 0
    %161 = vmatprep.subr.bf16.mxu0 0
    %162 = vmatpush1.bf16.msra.mxu0 0
    %163 = vmatprep.mubr.bf16.mxu0 0
    %164 = vmatmul.mubr.bf16.gmra.mrb[0].mxu0 %v79
    %v165 = vpop.f32.mrb[0].mxu0
    %v166 = vadd.f32 %v69, %v165
    %v167 = vpop.f32.mrb[0].mxu0
    %v168 = vpop.f32.mrb[0].mxu0
    %v169 = vadd.f32 %v69, %v168
    %v170 = vpop.f32.mrb[0].mxu0
    %171 = vmatprep.mubr.bf16.mxu0 0
    %172 = vmatmul.mubr.bf16.gmra.mrb[0].mxu0 %v80
    %v173 = vpop.f32.mrb[0].mxu0
    %v174 = vadd.f32 %v69, %v173
    %v175 = vpop.f32.mrb[0].mxu0
    %v176 = vpop.f32.mrb[0].mxu0
    %v177 = vadd.f32 %v69, %v176
    %v178 = vpop.f32.mrb[0].mxu0
    %179 = vdwg.mxu0
    %180 = vst [vmem:[#allocation7] sm:$0xff] %v166
    %181 = vst [vmem:[#allocation7 + $0x8] sm:$0xff] %v169
    %182 = vst [vmem:[#allocation7 + $0x10] sm:$0xff] %v174
    %183 = vst [vmem:[#allocation7 + $0x18] sm:$0xff] %v177
    // Predicated region
    $region22: #{tpu_custom_call.1} parent=1 // pred_check
      _
    $region23: #{tpu_custom_call.1} parent=1 // pred_check_branch
      %185 = sbr.rel (0) target = $region25
    $region24: #{tpu_custom_call.1} parent=1 // pred_region
      %s187 = ssub.s32 512, 512
      %188 = vsyncadd [#allocation4], %s187
      %s189 = sshll.u32 [#allocation7], 4
      %s190 = int_to_ptr.vmem [resolvable:$true] %s189
      %195 = dma.vmem_to_hbm [thread:$0]  %s190, 512, %s3, [#allocation4], 128, 128, 8
    $region25: #{tpu_custom_call.1} parent=1 // pred_fallthru
      _
    // Predicated region
    $region26: #{tpu_custom_call.1} parent=1 // pred_check
      _
    $region27: #{tpu_custom_call.1} parent=1 // pred_check_branch
      %197 = sbr.rel (0) target = $region29
    $region28: #{tpu_custom_call.1} parent=1 // pred_region
      %198 = dma.done [#allocation4], 512
    $region29: #{tpu_custom_call.1} parent=1 // pred_fallthru
      _
    %199 = vsyncpa [#allocation3], 1
    %200 = vsyncpa [#allocation6], 1
    %201 = vsyncpa [#allocation4], 1

</llo_original>
